<compile_context>
chip_gen: v5e
topology: v5e:2x2
jax: 0.10.0
libtpu: 0.0.40
codegen_flags: <defaults>
</compile_context>

<pallas_src>
import functools

import jax
import jax.numpy as jnp
from jax.experimental import pallas as pl
from jax.experimental.pallas import tpu as pltpu

BN_EPS = 1e-5
SIGMA_EPS = 1e-7


def _round_up(n, m):
    return ((n + m - 1) // m) * m


def _encoder_kernel(x_ref, w1_ref, w2_ref, w3_ref, vec_ref,
                    mu_ref, sigma_ref,
                    *, n_valid_rows, needs_row_mask, cp):
    inv_n = jnp.float32(1.0 / n_valid_rows)

    # Packed per-feature vectors, one (8, CP) f32 tile:
    #   rows: b1, g1, be1, b2, g2, be2, b3_mu, b3_sigma
    vec = vec_ref[...]
    b1, g1, be1 = vec[0:1, :], vec[1:2, :], vec[2:3, :]
    b2, g2, be2 = vec[3:4, :], vec[4:5, :], vec[5:6, :]
    b3m, b3s = vec[6:7, :], vec[7:8, :]

    if needs_row_mask:
        rows = jax.lax.broadcasted_iota(jnp.int32, (x_ref.shape[0], 1), 0)
        row_mask = (rows < n_valid_rows).astype(jnp.float32)
    else:
        row_mask = None

    def bn_relu(h, gamma, beta):
        # Fused training-mode BatchNorm1d (+ReLU): one (h - mean) pass reused
        # for the biased variance and the normalization; affine folded into a
        # single scale.  Padded rows are excluded from the statistics.
        hm = h if row_mask is None else h * row_mask
        mean = jnp.sum(hm, axis=0, keepdims=True) * inv_n
        d = h - mean
        dm = d if row_mask is None else d * row_mask
        var = jnp.sum(dm * dm, axis=0, keepdims=True) * inv_n
        scale = gamma * jax.lax.rsqrt(var + BN_EPS)
        return jnp.maximum(d * scale + beta, 0.0)

    # --- block 1: Linear + BN + ReLU (bf16 MXU inputs, f32 accumulate) ---
    h = jnp.dot(x_ref[...], w1_ref[...],
                preferred_element_type=jnp.float32) + b1
    h = bn_relu(h, g1, be1)

    # --- block 2: Linear + BN + ReLU ---
    hb = h.astype(w2_ref.dtype)
    h = jnp.dot(hb, w2_ref[...],
                preferred_element_type=jnp.float32) + b2
    h = bn_relu(h, g2, be2)

    # --- head: single fused [CP, 2*CP] dot; lane-aligned column split ---
    hb = h.astype(w3_ref.dtype)
    raw = jnp.dot(hb, w3_ref[...], preferred_element_type=jnp.float32)
    mu = raw[:, :cp] + b3m
    sraw = raw[:, cp:] + b3s

    mu_ref[...] = mu.astype(mu_ref.dtype)
    sigma_ref[...] = (jax.nn.softplus(sraw) + SIGMA_EPS).astype(sigma_ref.dtype)


def prepare_encoder_params(params, C, *, matmul_dtype=jnp.bfloat16):
    """One-time preprocessing: pad to lane-dense shapes, cast MXU inputs, pack
    the eight per-feature vectors into one (8, CP) f32 tile.  Call ONCE and
    reuse the result across forward calls (keeps per-call weight HBM traffic
    down to the kernel's own reads)."""
    (w1, b1, g1, be1, w2, b2, g2, be2, w3, b3) = params
    CP = max(128, _round_up(C, 128))

    def pad2(a, rows, cols, value=0.0):
        r, c = a.shape
        if r == rows and c == cols:
            return a
        return jnp.pad(a, ((0, rows - r), (0, cols - c)),
                       constant_values=value)

    w1_p = pad2(w1, CP, CP).astype(matmul_dtype)
    w2_p = pad2(w2, CP, CP).astype(matmul_dtype)
    # Head weight kept packed as [CP, 2*CP]; mu half in cols [:CP], sigma half
    # in cols [CP:] (both halves zero-padded to CP columns so the in-kernel
    # split point lands on a lane boundary).
    w3_p = jnp.concatenate(
        [pad2(w3[:, :C], CP, CP), pad2(w3[:, C:], CP, CP)],
        axis=1).astype(matmul_dtype)

    vec = jnp.concatenate([
        pad2(b1, 1, CP),
        pad2(g1, 1, CP, value=1.0),
        pad2(be1, 1, CP),
        pad2(b2, 1, CP),
        pad2(g2, 1, CP, value=1.0),
        pad2(be2, 1, CP),
        pad2(b3[:, :C], 1, CP),
        pad2(b3[:, C:], 1, CP),
    ], axis=0).astype(jnp.float32)

    # Materialize once so later calls don't re-trace the padding graph.
    w1_p, w2_p, w3_p, vec = jax.block_until_ready((w1_p, w2_p, w3_p, vec))

    return dict(w1=w1_p, w2=w2_p, w3=w3_p, vec=vec,
                C=C, CP=CP, matmul_dtype=matmul_dtype)


def encoder_forward(x, prepared):
    """x: [B, C] float32.  `prepared` from prepare_encoder_params.
    Returns (mu, sigma), each [B, C] float32."""
    B, C = x.shape
    if B == 0:
        raise ValueError("encoder_forward: batch size must be > 0 "
                         "(BatchNorm statistics undefined).")
    assert C == prepared["C"], "channel mismatch vs. prepared params"
    CP = prepared["CP"]
    matmul_dtype = prepared["matmul_dtype"]

    # Sublane packing: f32 -> 8 rows/vreg, bf16 -> 16, int8 -> 32.
    itemsize = jnp.dtype(matmul_dtype).itemsize
    row_mult = {4: 8, 2: 16, 1: 32}.get(itemsize, 8)
    BP = max(row_mult, _round_up(B, row_mult))

    x_p = x
    if (B, C) != (BP, CP):
        x_p = jnp.pad(x, ((0, BP - B), (0, CP - C)))
    x_p = x_p.astype(matmul_dtype)

    # VMEM budget derived from actual padded sizes (headroom for traced
    # intermediates), capped at 56 MiB so the resident-weight design also
    # fits v7x's 64 MiB VMEM.
    in_bytes = (BP * CP + 2 * CP * CP + CP * 2 * CP) * itemsize + 8 * CP * 4
    out_bytes = 2 * BP * CP * 4
    scratch_est = 3 * BP * CP * 4
    vmem_limit = int(min(max(2 * (in_bytes + out_bytes) + scratch_est
                             + (4 << 20), 32 << 20), 56 << 20))

    full = lambda shape: pl.BlockSpec(shape, lambda: (0,) * len(shape),
                                      memory_space=pltpu.MemorySpace.VMEM)

    kernel = functools.partial(_encoder_kernel,
                               n_valid_rows=B,
                               needs_row_mask=(B != BP),
                               cp=CP)

    mu_p, sigma_p = pl.pallas_call(
        kernel,
        grid=(),
        in_specs=[
            full((BP, CP)),        # x
            full((CP, CP)),        # w1 (pre-transposed [in, out])
            full((CP, CP)),        # w2
            full((CP, 2 * CP)),    # w3 packed (mu | sigma)
            full((8, CP)),         # packed b/gamma/beta vectors
        ],
        out_specs=(full((BP, CP)), full((BP, CP))),
        out_shape=(jax.ShapeDtypeStruct((BP, CP), jnp.float32),
                   jax.ShapeDtypeStruct((BP, CP), jnp.float32)),
        compiler_params=pltpu.CompilerParams(vmem_limit_bytes=vmem_limit),
    )(x_p, prepared["w1"], prepared["w2"], prepared["w3"], prepared["vec"])

    return mu_p[:B, :C], sigma_p[:B, :C]


def init_params(key, C):
    """Deterministic parameter init mimicking nn.Linear defaults (uniform in
    +/- 1/sqrt(fan_in)); BatchNorm gamma=1, beta=0.  Linear weights stored
    pre-transposed as [in, out]."""
    ks = jax.random.split(key, 6)
    bound = 1.0 / jnp.sqrt(jnp.float32(C))

    def lin(kw, kb, in_dim, out_dim):
        w = jax.random.uniform(kw, (in_dim, out_dim), jnp.float32, -bound, bound)
        b = jax.random.uniform(kb, (1, out_dim), jnp.float32, -bound, bound)
        return w, b

    w1, b1 = lin(ks[0], ks[1], C, C)
    w2, b2 = lin(ks[2], ks[3], C, C)
    w3, b3 = lin(ks[4], ks[5], C, 2 * C)

    g1 = jnp.ones((1, C), jnp.float32)
    be1 = jnp.zeros((1, C), jnp.float32)
    g2 = jnp.ones((1, C), jnp.float32)
    be2 = jnp.zeros((1, C), jnp.float32)

    return (w1, b1, g1, be1, w2, b2, g2, be2, w3, b3)


def reference_forward(x, params, *, matmul_dtype=jnp.bfloat16):
    """Pure-JAX reference of the same math (same bf16 matmul quantization)."""
    (w1, b1, g1, be1, w2, b2, g2, be2, w3, b3) = params
    C = x.shape[1]

    def dot(a, b):
        return jnp.dot(a.astype(matmul_dtype), b.astype(matmul_dtype),
                       preferred_element_type=jnp.float32)

    def bn(h, g, be):
        m = jnp.mean(h, axis=0, keepdims=True)
        d = h - m
        v = jnp.mean(d * d, axis=0, keepdims=True)
        return d * (g * jax.lax.rsqrt(v + BN_EPS)) + be

    h = jnp.maximum(bn(dot(x, w1) + b1, g1, be1), 0.0)
    h = jnp.maximum(bn(dot(h, w2) + b2, g2, be2), 0.0)
    mu = dot(h, w3[:, :C]) + b3[:, :C]
    sigma = jax.nn.softplus(dot(h, w3[:, C:]) + b3[:, C:]) + SIGMA_EPS
    return mu, sigma


if __name__ == "__main__":
    B, C = 8, 32  # batch=8, in_channel=32
    key = jax.random.PRNGKey(0)
    kx, kp = jax.random.split(key)

    x = jax.random.normal(kx, (B, C), jnp.float32)
    params = init_params(kp, C)

    prepared = prepare_encoder_params(params, C)   # one-time, hoisted

    mu, sigma = encoder_forward(x, prepared)
    jax.block_until_ready((mu, sigma))

    mu_ref, sigma_ref = reference_forward(x, params)
    assert mu.shape == (B, C) and sigma.shape == (B, C)
    assert jnp.allclose(mu, mu_ref, atol=1e-3, rtol=1e-3)
    assert jnp.allclose(sigma, sigma_ref, atol=1e-3, rtol=1e-3)
    assert bool(jnp.all(sigma > 0))

    print("KERNEL_OK")
</pallas_src>

<mosaic_0001>
module attributes {stable_mosaic.version = 11 : i64} {
  func.func @_encoder_kernel(%arg0: memref<16x128xbf16, #tpu.memory_space<vmem>>, %arg1: memref<128x128xbf16, #tpu.memory_space<vmem>>, %arg2: memref<128x128xbf16, #tpu.memory_space<vmem>>, %arg3: memref<128x256xbf16, #tpu.memory_space<vmem>>, %arg4: memref<8x128xf32, #tpu.memory_space<vmem>>, %arg5: memref<16x128xf32, #tpu.memory_space<vmem>>, %arg6: memref<16x128xf32, #tpu.memory_space<vmem>>) attributes {dimension_semantics = [], scalar_prefetch = 0 : i64, scratch_operands = 0 : i64, tpu.core_type = #tpu.core_type<tc>} {
    %c0 = arith.constant 0 : index
    %c0_0 = arith.constant 0 : index
    %0 = vector.load %arg4[%c0, %c0_0] : memref<8x128xf32, #tpu.memory_space<vmem>>, vector<8x128xf32>
    %1 = vector.extract_strided_slice %0 {offsets = [0, 0], sizes = [1, 128], strides = [1, 1]} : vector<8x128xf32> to vector<1x128xf32>
    %2 = vector.extract_strided_slice %0 {offsets = [1, 0], sizes = [1, 128], strides = [1, 1]} : vector<8x128xf32> to vector<1x128xf32>
    %3 = vector.extract_strided_slice %0 {offsets = [2, 0], sizes = [1, 128], strides = [1, 1]} : vector<8x128xf32> to vector<1x128xf32>
    %4 = vector.extract_strided_slice %0 {offsets = [3, 0], sizes = [1, 128], strides = [1, 1]} : vector<8x128xf32> to vector<1x128xf32>
    %5 = vector.extract_strided_slice %0 {offsets = [4, 0], sizes = [1, 128], strides = [1, 1]} : vector<8x128xf32> to vector<1x128xf32>
    %6 = vector.extract_strided_slice %0 {offsets = [5, 0], sizes = [1, 128], strides = [1, 1]} : vector<8x128xf32> to vector<1x128xf32>
    %7 = vector.extract_strided_slice %0 {offsets = [6, 0], sizes = [1, 128], strides = [1, 1]} : vector<8x128xf32> to vector<1x128xf32>
    %8 = vector.extract_strided_slice %0 {offsets = [7, 0], sizes = [1, 128], strides = [1, 1]} : vector<8x128xf32> to vector<1x128xf32>
    %9 = tpu.iota {dimensions = array<i32: 0>} : vector<16x1xi32>
    %c8_i32 = arith.constant 8 : i32
    %10 = vector.broadcast %c8_i32 : i32 to vector<16x1xi32>
    %11 = arith.cmpi slt, %9, %10 : vector<16x1xi32>
    %12 = arith.extui %11 : vector<16x1xi1> to vector<16x1xi32>
    %13 = arith.sitofp %12 : vector<16x1xi32> to vector<16x1xf32>
    %c0_1 = arith.constant 0 : index
    %c0_2 = arith.constant 0 : index
    %14 = vector.load %arg0[%c0_1, %c0_2] : memref<16x128xbf16, #tpu.memory_space<vmem>>, vector<16x128xbf16>
    %c0_3 = arith.constant 0 : index
    %c0_4 = arith.constant 0 : index
    %15 = vector.load %arg1[%c0_3, %c0_4] : memref<128x128xbf16, #tpu.memory_space<vmem>>, vector<128x128xbf16>
    %cst = arith.constant dense<0.000000e+00> : vector<16x128xf32>
    %16 = tpu.matmul %14, %15, %cst {dimension_numbers = #tpu.dot_dimension_numbers<[1], [0], [0], [1], [0, 0, 1, 1], [], []>} : vector<16x128xbf16>, vector<128x128xbf16>, vector<16x128xf32> -> vector<16x128xf32>
    %17 = vector.broadcast %1 : vector<1x128xf32> to vector<16x128xf32>
    %18 = arith.addf %16, %17 : vector<16x128xf32>
    %19 = vector.broadcast %13 : vector<16x1xf32> to vector<16x128xf32>
    %20 = arith.mulf %18, %19 : vector<16x128xf32>
    %cst_5 = arith.constant dense<0.000000e+00> : vector<128xf32>
    %21 = vector.multi_reduction <add>, %20, %cst_5 [0] : vector<16x128xf32> to vector<128xf32>
    %22 = vector.shape_cast %21 : vector<128xf32> to vector<1x128xf32>
    %cst_6 = arith.constant 1.250000e-01 : f32
    %23 = vector.broadcast %cst_6 : f32 to vector<1x128xf32>
    %24 = arith.mulf %22, %23 : vector<1x128xf32>
    %25 = vector.broadcast %24 : vector<1x128xf32> to vector<16x128xf32>
    %26 = arith.subf %18, %25 : vector<16x128xf32>
    %27 = vector.broadcast %13 : vector<16x1xf32> to vector<16x128xf32>
    %28 = arith.mulf %26, %27 : vector<16x128xf32>
    %29 = arith.mulf %28, %28 : vector<16x128xf32>
    %cst_7 = arith.constant dense<0.000000e+00> : vector<128xf32>
    %30 = vector.multi_reduction <add>, %29, %cst_7 [0] : vector<16x128xf32> to vector<128xf32>
    %31 = vector.shape_cast %30 : vector<128xf32> to vector<1x128xf32>
    %cst_8 = arith.constant 1.250000e-01 : f32
    %32 = vector.broadcast %cst_8 : f32 to vector<1x128xf32>
    %33 = arith.mulf %31, %32 : vector<1x128xf32>
    %cst_9 = arith.constant 9.99999974E-6 : f32
    %34 = vector.broadcast %cst_9 : f32 to vector<1x128xf32>
    %35 = arith.addf %33, %34 : vector<1x128xf32>
    %36 = math.rsqrt %35 : vector<1x128xf32>
    %37 = arith.mulf %2, %36 : vector<1x128xf32>
    %38 = vector.broadcast %37 : vector<1x128xf32> to vector<16x128xf32>
    %39 = arith.mulf %26, %38 : vector<16x128xf32>
    %40 = vector.broadcast %3 : vector<1x128xf32> to vector<16x128xf32>
    %41 = arith.addf %39, %40 : vector<16x128xf32>
    %cst_10 = arith.constant 0.000000e+00 : f32
    %42 = vector.broadcast %cst_10 : f32 to vector<16x128xf32>
    %43 = arith.maximumf %41, %42 : vector<16x128xf32>
    %44 = arith.truncf %43 : vector<16x128xf32> to vector<16x128xbf16>
    %c0_11 = arith.constant 0 : index
    %c0_12 = arith.constant 0 : index
    %45 = vector.load %arg2[%c0_11, %c0_12] : memref<128x128xbf16, #tpu.memory_space<vmem>>, vector<128x128xbf16>
    %cst_13 = arith.constant dense<0.000000e+00> : vector<16x128xf32>
    %46 = tpu.matmul %44, %45, %cst_13 {dimension_numbers = #tpu.dot_dimension_numbers<[1], [0], [0], [1], [0, 0, 1, 1], [], []>} : vector<16x128xbf16>, vector<128x128xbf16>, vector<16x128xf32> -> vector<16x128xf32>
    %47 = vector.broadcast %4 : vector<1x128xf32> to vector<16x128xf32>
    %48 = arith.addf %46, %47 : vector<16x128xf32>
    %49 = vector.broadcast %13 : vector<16x1xf32> to vector<16x128xf32>
    %50 = arith.mulf %48, %49 : vector<16x128xf32>
    %cst_14 = arith.constant dense<0.000000e+00> : vector<128xf32>
    %51 = vector.multi_reduction <add>, %50, %cst_14 [0] : vector<16x128xf32> to vector<128xf32>
    %52 = vector.shape_cast %51 : vector<128xf32> to vector<1x128xf32>
    %cst_15 = arith.constant 1.250000e-01 : f32
    %53 = vector.broadcast %cst_15 : f32 to vector<1x128xf32>
    %54 = arith.mulf %52, %53 : vector<1x128xf32>
    %55 = vector.broadcast %54 : vector<1x128xf32> to vector<16x128xf32>
    %56 = arith.subf %48, %55 : vector<16x128xf32>
    %57 = vector.broadcast %13 : vector<16x1xf32> to vector<16x128xf32>
    %58 = arith.mulf %56, %57 : vector<16x128xf32>
    %59 = arith.mulf %58, %58 : vector<16x128xf32>
    %cst_16 = arith.constant dense<0.000000e+00> : vector<128xf32>
    %60 = vector.multi_reduction <add>, %59, %cst_16 [0] : vector<16x128xf32> to vector<128xf32>
    %61 = vector.shape_cast %60 : vector<128xf32> to vector<1x128xf32>
    %cst_17 = arith.constant 1.250000e-01 : f32
    %62 = vector.broadcast %cst_17 : f32 to vector<1x128xf32>
    %63 = arith.mulf %61, %62 : vector<1x128xf32>
    %cst_18 = arith.constant 9.99999974E-6 : f32
    %64 = vector.broadcast %cst_18 : f32 to vector<1x128xf32>
    %65 = arith.addf %63, %64 : vector<1x128xf32>
    %66 = math.rsqrt %65 : vector<1x128xf32>
    %67 = arith.mulf %5, %66 : vector<1x128xf32>
    %68 = vector.broadcast %67 : vector<1x128xf32> to vector<16x128xf32>
    %69 = arith.mulf %56, %68 : vector<16x128xf32>
    %70 = vector.broadcast %6 : vector<1x128xf32> to vector<16x128xf32>
    %71 = arith.addf %69, %70 : vector<16x128xf32>
    %cst_19 = arith.constant 0.000000e+00 : f32
    %72 = vector.broadcast %cst_19 : f32 to vector<16x128xf32>
    %73 = arith.maximumf %71, %72 : vector<16x128xf32>
    %74 = arith.truncf %73 : vector<16x128xf32> to vector<16x128xbf16>
    %c0_20 = arith.constant 0 : index
    %c0_21 = arith.constant 0 : index
    %75 = vector.load %arg3[%c0_20, %c0_21] : memref<128x256xbf16, #tpu.memory_space<vmem>>, vector<128x256xbf16>
    %cst_22 = arith.constant dense<0.000000e+00> : vector<16x256xf32>
    %76 = tpu.matmul %74, %75, %cst_22 {dimension_numbers = #tpu.dot_dimension_numbers<[1], [0], [0], [1], [0, 0, 1, 1], [], []>} : vector<16x128xbf16>, vector<128x256xbf16>, vector<16x256xf32> -> vector<16x256xf32>
    %77 = vector.extract_strided_slice %76 {offsets = [0, 0], sizes = [16, 128], strides = [1, 1]} : vector<16x256xf32> to vector<16x128xf32>
    %78 = vector.broadcast %7 : vector<1x128xf32> to vector<16x128xf32>
    %79 = arith.addf %77, %78 : vector<16x128xf32>
    %80 = vector.extract_strided_slice %76 {offsets = [0, 128], sizes = [16, 128], strides = [1, 1]} : vector<16x256xf32> to vector<16x128xf32>
    %81 = vector.broadcast %8 : vector<1x128xf32> to vector<16x128xf32>
    %82 = arith.addf %80, %81 : vector<16x128xf32>
    %c0_23 = arith.constant 0 : index
    %c0_24 = arith.constant 0 : index
    %83 = vector.load %arg5[%c0_23, %c0_24] : memref<16x128xf32, #tpu.memory_space<vmem>>, vector<16x128xf32>
    tpu.vector_store %arg5[%c0_23, %c0_24], %79 {strides = array<i32>} : memref<16x128xf32, #tpu.memory_space<vmem>>, vector<16x128xf32>,
    %cst_25 = arith.constant 0.000000e+00 : f32
    %84 = vector.broadcast %cst_25 : f32 to vector<16x128xf32>
    %85 = arith.maximumf %82, %84 : vector<16x128xf32>
    %86 = vector.broadcast %cst_25 : f32 to vector<16x128xf32>
    %87 = arith.subf %82, %86 : vector<16x128xf32>
    %88 = arith.cmpf one, %87, %87 : vector<16x128xf32>
    %89 = vector.broadcast %cst_25 : f32 to vector<16x128xf32>
    %90 = arith.addf %82, %89 : vector<16x128xf32>
    %91 = math.absf %87 : vector<16x128xf32>
    %cst_26 = arith.constant 0.000000e+00 : f32
    %92 = vector.broadcast %cst_26 : f32 to vector<16x128xf32>
    %93 = arith.subf %92, %91 : vector<16x128xf32>
    %94 = math.exp %93 : vector<16x128xf32>
    %95 = math.log1p %94 : vector<16x128xf32>
    %96 = arith.addf %85, %95 : vector<16x128xf32>
    %97 = arith.select %88, %90, %96 : vector<16x128xi1>, vector<16x128xf32>
    %cst_27 = arith.constant 1.000000e-07 : f32
    %98 = vector.broadcast %cst_27 : f32 to vector<16x128xf32>
    %99 = arith.addf %97, %98 : vector<16x128xf32>
    %c0_28 = arith.constant 0 : index
    %c0_29 = arith.constant 0 : index
    %100 = vector.load %arg6[%c0_28, %c0_29] : memref<16x128xf32, #tpu.memory_space<vmem>>, vector<16x128xf32>
    tpu.vector_store %arg6[%c0_28, %c0_29], %99 {strides = array<i32>} : memref<16x128xf32, #tpu.memory_space<vmem>>, vector<16x128xf32>,
    return
  }
}

</mosaic_0001>

<llo_original>
// kernel: tpu_custom_call.1
$region0: #{tpu_custom_call.1}
  #allocation0 [shape = 'u32[]', space=smem, size = 0x4, offset = 0x4, fixed_abs, tag = 'smem constant byte address 0x4 - core index']
  #allocation1 [shape = 'u32[72,128]{1,0:T(1,128)}', space=vmem, size = 0x9000, scoped, tag = 'internal scratch']
  %s0 = inlined_call_operand.hbm [shape: bf16[16,128], index: 0, kind: input, shape index: {}]
  %s1 = inlined_call_operand.hbm [shape: bf16[128,128], index: 1, kind: input, shape index: {}]
  %s2 = inlined_call_operand.hbm [shape: bf16[128,128], index: 2, kind: input, shape index: {}]
  %s3 = inlined_call_operand.hbm [shape: bf16[128,256], index: 3, kind: input, shape index: {}]
  %s4 = inlined_call_operand.hbm [shape: f32[8,128], index: 4, kind: input, shape index: {}]
  %s5 = inlined_call_operand.hbm [shape: f32[16,128], index: 5, kind: output, shape index: {0}]
  %s6 = inlined_call_operand.hbm [shape: f32[16,128], index: 6, kind: output, shape index: {1}]
  %7 = xla_tuple %s5, %s6
  %s8 = sld [smem:[#allocation0]]
  $region58: #{tpu_custom_call.1} parent=0
    _
  %s10 = ssub.s32 1, %s8
  %s11 = scalar_select 0, %s10, %s8
  $region1: #{tpu_custom_call.1} parent=0
    #allocation2 [shape = 'u8[4096]{0}', space=vmem, size = 0x1000, scoped, tag = 'input window, operand 0, single buffered']
    #allocation3 [shape = 's32[1]{0}', space=sflag, size = 0x4, scoped, tag = 'scoped memory for tpu_custom_call.1']
    #allocation4 [shape = 's32[1]{0}', space=sflag, size = 0x4, scoped, tag = 'scoped memory for tpu_custom_call.1']
    #allocation5 [shape = 'u8[32768]{0}', space=vmem, size = 0x8000, scoped, tag = 'input window, operand 1, single buffered']
    #allocation6 [shape = 's32[1]{0}', space=sflag, size = 0x4, scoped, tag = 'scoped memory for tpu_custom_call.1']
    #allocation7 [shape = 'u8[32768]{0}', space=vmem, size = 0x8000, scoped, tag = 'input window, operand 2, single buffered']
    #allocation8 [shape = 'u8[65536]{0}', space=vmem, size = 0x10000, scoped, tag = 'input window, operand 3, single buffered']
    #allocation9 [shape = 's32[1]{0}', space=sflag, size = 0x4, scoped, tag = 'scoped memory for tpu_custom_call.1']
    #allocation10 [shape = 'u8[4096]{0}', space=vmem, size = 0x1000, scoped, tag = 'input window, operand 4, single buffered']
    #allocation11 [shape = 'u8[8192]{0}', space=vmem, size = 0x2000, scoped, tag = 'output window, operand 0, single buffered']
    #allocation12 [shape = 'u8[8192]{0}', space=vmem, size = 0x2000, scoped, tag = 'output window, operand 1, single buffered']
    #allocation13 [shape = 's32[1]{0}', space=sflag, size = 0x4, scoped, tag = 'scoped memory for tpu_custom_call.1']
    %12 = vsyncpa [#allocation3], 0
    %13 = vsyncpa [#allocation6], 0
    %14 = vsyncpa [#allocation9], 0
    %15 = vsyncpa [#allocation4], 0
    %16 = vsyncpa [#allocation13], 0
    // Predicated region
    $region2: #{tpu_custom_call.1} parent=1 // pred_check
      _
    $region3: #{tpu_custom_call.1} parent=1 // pred_check_branch
      %18 = sbr.rel (0) target = $region5
    $region4: #{tpu_custom_call.1} parent=1 // pred_region
      %20 = vsyncadd [#allocation3], 0
      %s21 = sshll.u32 %s0, 4
      %s22 = int_to_ptr.hbm [resolvable:$true] %s21
      %s23 = sshll.u32 [#allocation2], 4
      %s24 = int_to_ptr.vmem [resolvable:$true] %s23
      %29 = dma.hbm_to_vmem [thread:$0]  %s22, 128, %s24, [#allocation3], 64, 64, 4
    $region5: #{tpu_custom_call.1} parent=1 // pred_fallthru
      _
    // Predicated region
    $region6: #{tpu_custom_call.1} parent=1 // pred_check
      _
    $region7: #{tpu_custom_call.1} parent=1 // pred_check_branch
      %31 = sbr.rel (0) target = $region9
    $region8: #{tpu_custom_call.1} parent=1 // pred_region
      %33 = vsyncadd [#allocation6], 0
      %s34 = sshll.u32 %s1, 4
      %s35 = int_to_ptr.hbm [resolvable:$true] %s34
      %s36 = sshll.u32 [#allocation5], 4
      %s37 = int_to_ptr.vmem [resolvable:$true] %s36
      %42 = dma.hbm_to_vmem [thread:$0]  %s35, 1024, %s37, [#allocation6], 64, 64, 4
    $region9: #{tpu_custom_call.1} parent=1 // pred_fallthru
      _
    // Predicated region
    $region10: #{tpu_custom_call.1} parent=1 // pred_check
      _
    $region11: #{tpu_custom_call.1} parent=1 // pred_check_branch
      %44 = sbr.rel (0) target = $region13
    $region12: #{tpu_custom_call.1} parent=1 // pred_region
      %46 = vsyncadd [#allocation6], 0
      %s47 = sshll.u32 %s2, 4
      %s48 = int_to_ptr.hbm [resolvable:$true] %s47
      %s49 = sshll.u32 [#allocation7], 4
      %s50 = int_to_ptr.vmem [resolvable:$true] %s49
      %55 = dma.hbm_to_vmem [thread:$0]  %s48, 1024, %s50, [#allocation6], 64, 64, 4
    $region13: #{tpu_custom_call.1} parent=1 // pred_fallthru
      _
    // Predicated region
    $region14: #{tpu_custom_call.1} parent=1 // pred_check
      _
    $region15: #{tpu_custom_call.1} parent=1 // pred_check_branch
      %57 = sbr.rel (0) target = $region17
    $region16: #{tpu_custom_call.1} parent=1 // pred_region
      %59 = vsyncadd [#allocation9], 0
      %s60 = sshll.u32 %s3, 4
      %s61 = int_to_ptr.hbm [resolvable:$true] %s60
      %s62 = sshll.u32 [#allocation8], 4
      %s63 = int_to_ptr.vmem [resolvable:$true] %s62
      %68 = dma.hbm_to_vmem [thread:$0]  %s61, 2048, %s63, [#allocation9], 128, 128, 8
    $region17: #{tpu_custom_call.1} parent=1 // pred_fallthru
      _
    // Predicated region
    $region18: #{tpu_custom_call.1} parent=1 // pred_check
      _
    $region19: #{tpu_custom_call.1} parent=1 // pred_check_branch
      %70 = sbr.rel (0) target = $region21
    $region20: #{tpu_custom_call.1} parent=1 // pred_region
      %72 = vsyncadd [#allocation9], 0
      %s74 = sshll.u32 %s4, 4
      %s75 = int_to_ptr.hbm [resolvable:$true] %s74
      %s76 = sshll.u32 [#allocation10], 4
      %s77 = int_to_ptr.vmem [resolvable:$true] %s76
      %79 = dma.hbm_to_vmem [thread:$0]  %s75, 128, %s77, [#allocation9]
    $region21: #{tpu_custom_call.1} parent=1 // pred_fallthru
      _
    // Predicated region
    $region22: #{tpu_custom_call.1} parent=1 // pred_check
      _
    $region23: #{tpu_custom_call.1} parent=1 // pred_check_branch
      %81 = sbr.rel (0) target = $region25
    $region24: #{tpu_custom_call.1} parent=1 // pred_region
      %83 = dma.done [#allocation3], 128
    $region25: #{tpu_custom_call.1} parent=1 // pred_fallthru
      _
    // Predicated region
    $region26: #{tpu_custom_call.1} parent=1 // pred_check
      _
    $region27: #{tpu_custom_call.1} parent=1 // pred_check_branch
      %85 = sbr.rel (0) target = $region29
    $region28: #{tpu_custom_call.1} parent=1 // pred_region
      %87 = dma.done [#allocation6], 1024
    $region29: #{tpu_custom_call.1} parent=1 // pred_fallthru
      _
    // Predicated region
    $region30: #{tpu_custom_call.1} parent=1 // pred_check
      _
    $region31: #{tpu_custom_call.1} parent=1 // pred_check_branch
      %89 = sbr.rel (0) target = $region33
    $region32: #{tpu_custom_call.1} parent=1 // pred_region
      %91 = dma.done [#allocation6], 1024
    $region33: #{tpu_custom_call.1} parent=1 // pred_fallthru
      _
    // Predicated region
    $region34: #{tpu_custom_call.1} parent=1 // pred_check
      _
    $region35: #{tpu_custom_call.1} parent=1 // pred_check_branch
      %93 = sbr.rel (0) target = $region37
    $region36: #{tpu_custom_call.1} parent=1 // pred_region
      %95 = dma.done [#allocation9], 2048
    $region37: #{tpu_custom_call.1} parent=1 // pred_fallthru
      _
    // Predicated region
    $region38: #{tpu_custom_call.1} parent=1 // pred_check
      _
    $region39: #{tpu_custom_call.1} parent=1 // pred_check_branch
      %97 = sbr.rel (0) target = $region41
    $region40: #{tpu_custom_call.1} parent=1 // pred_region
      %99 = dma.done [#allocation9], 128
    $region41: #{tpu_custom_call.1} parent=1 // pred_fallthru
      _
    %v100 = vld [vmem:[#allocation10] sm:$0xff]
    %v101 = vlaneseq
    %v102 = vshrl.u32 %v101, 7
    %v103 = vadd.s32 %v102, 8
    %vm104 = vcmp.lt.s32.totalorder %v102, 8
    %vm105 = vcmp.lt.s32.totalorder %v103, 8
    %v106 = vsel %vm104, 1, 0
    %v107 = vsel %vm105, 1, 0
    %v108 = vcvt.s32.f32 %v106
    %v109 = vcvt.s32.f32 %v107
    %v110 = vld [vmem:[#allocation2] sm:$0xf]
    %v111 = vld [vmem:[#allocation2 + $0x4] sm:$0xf]
    %v112 = vld [vmem:[#allocation5] sm:$0xf]
    %v113 = vld [vmem:[#allocation5 + $0x4] sm:$0xf]
    %v114 = vld [vmem:[#allocation5 + $0x8] sm:$0xf]
    %v115 = vld [vmem:[#allocation5 + $0xc] sm:$0xf]
    %v116 = vld [vmem:[#allocation5 + $0x10] sm:$0xf]
    %v117 = vld [vmem:[#allocation5 + $0x14] sm:$0xf]
    %v118 = vld [vmem:[#allocation5 + $0x18] sm:$0xf]
    %v119 = vld [vmem:[#allocation5 + $0x1c] sm:$0xf]
    %v120 = vld [vmem:[#allocation5 + $0x20] sm:$0xf]
    %v121 = vld [vmem:[#allocation5 + $0x24] sm:$0xf]
    %v122 = vld [vmem:[#allocation5 + $0x28] sm:$0xf]
    %v123 = vld [vmem:[#allocation5 + $0x2c] sm:$0xf]
    %v124 = vld [vmem:[#allocation5 + $0x30] sm:$0xf]
    %v125 = vld [vmem:[#allocation5 + $0x34] sm:$0xf]
    %v126 = vld [vmem:[#allocation5 + $0x38] sm:$0xf]
    %v127 = vld [vmem:[#allocation5 + $0x3c] sm:$0xf]
    %v128 = vperm.slane %v100, 0
    %v131 = vunpack.c.l.b16 %v110
    %v132 = vunpack.c.l.b16 %v111
    %v133 = vpack.c.b16 %v132, %v131
    %v151 = vunpack.c.l.b16 %v112
    %v152 = vunpack.c.l.b16 %v113
    %v153 = vunpack.c.l.b16 %v114
    %v154 = vunpack.c.l.b16 %v115
    %v155 = vunpack.c.l.b16 %v116
    %v156 = vunpack.c.l.b16 %v117
    %v157 = vunpack.c.l.b16 %v118
    %v158 = vunpack.c.l.b16 %v119
    %v159 = vunpack.c.l.b16 %v120
    %v160 = vunpack.c.l.b16 %v121
    %v161 = vunpack.c.l.b16 %v122
    %v162 = vunpack.c.l.b16 %v123
    %v163 = vunpack.c.l.b16 %v124
    %v164 = vunpack.c.l.b16 %v125
    %v165 = vunpack.c.l.b16 %v126
    %v166 = vunpack.c.l.b16 %v127
    %v167 = vpack.c.b16 %v152, %v151
    %v168 = vpack.c.b16 %v154, %v153
    %v169 = vpack.c.b16 %v156, %v155
    %v170 = vpack.c.b16 %v158, %v157
    %v171 = vpack.c.b16 %v160, %v159
    %v172 = vpack.c.b16 %v162, %v161
    %v173 = vpack.c.b16 %v164, %v163
    %v174 = vpack.c.b16 %v166, %v165
    %183 = vmatpush.bf16.msra.mxu0 %v174
    %184 = vmatpush.bf16.msra.mxu0 %v173
    %185 = vmatpush.bf16.msra.mxu0 %v172
    %186 = vmatpush.bf16.msra.mxu0 %v171
    %187 = vmatpush.bf16.msra.mxu0 %v170
    %188 = vmatpush.bf16.msra.mxu0 %v169
    %189 = vmatpush.bf16.msra.mxu0 %v168
    %190 = vmatpush.bf16.msra.mxu0 %v167
    %191 = vmatmul.bf16.gmra.mxu0 %v133
    %v192 = vpop.f32.mrf.mxu0
    %v193 = vadd.f32 %v128, %v192
    %v194 = vpop.f32.mrf.mxu0
    %v195 = vadd.f32 %v128, %v194
    %196 = vdwg.mxu0
    %v197 = vmul.f32 %v193, %v108
    %v198 = vmul.f32 %v195, %v109
    %v199 = vadd.f32 %v197, %v198
    %v200 = vrot.slane %v199, 4
    %v201 = vadd.f32 %v199, %v200
    %v202 = vrot.slane %v201, 2
    %v203 = vadd.f32 %v201, %v202
    %v204 = vrot.slane %v203, 1
    %v205 = vadd.f32 %v203, %v204
    %v206 = vmul.f32 %v205, 0.125
    %v207 = vsub.f32 %v193, %v206
    %v208 = vsub.f32 %v195, %v206
    %v209 = vmul.f32 %v207, %v108
    %v210 = vmul.f32 %v208, %v109
    %v211 = vmul.f32 %v209, %v209
    %v212 = vmul.f32 %v210, %v210
    %v213 = vadd.f32 %v211, %v212
    %v214 = vrot.slane %v213, 4
    %v215 = vadd.f32 %v213, %v214
    %v216 = vrot.slane %v215, 2
    %v217 = vadd.f32 %v215, %v216
    %v218 = vrot.slane %v217, 1
    %v219 = vadd.f32 %v217, %v218
    %v220 = vmul.f32 %v219, 0.125
    %v221 = vadd.f32 %v220, 1e-05
    %v222 = vrsqrt.pop %v221
    %v223 = vmul.f32 %v222, %v221
    %v224 = vmul.f32 %v223, %v222
    %v225 = vmul.f32 0.5, %v224
    %v226 = vsub.f32 1.5, %v225
    %v227 = vmul.f32 %v222, %v226
    %vm228 = vweird.f32 %v221
    %vm229 = vweird.f32 %v222
    %vm230 = vmor %vm228, %vm229
    %v231 = vsel %vm230, %v222, %v227
    %v232 = vmul.f32 %v100, %v231
    %v233 = vperm.slane %v232, 1
    %v234 = vmul.f32 %v207, %v233
    %v235 = vmul.f32 %v208, %v233
    %v236 = vperm.slane %v100, 2
    %v237 = vadd.f32 %v234, %v236
    %v238 = vadd.f32 %v235, %v236
    %v239 = vmax.f32 %v237, 0.0
    %v240 = vmax.f32 %v238, 0.0
    %v241 = vpack.c.bf16 %v240, %v239
    %v242 = vld [vmem:[#allocation7] sm:$0xf]
    %v243 = vld [vmem:[#allocation7 + $0x4] sm:$0xf]
    %v244 = vld [vmem:[#allocation7 + $0x8] sm:$0xf]
    %v245 = vld [vmem:[#allocation7 + $0xc] sm:$0xf]
    %v246 = vld [vmem:[#allocation7 + $0x10] sm:$0xf]
    %v247 = vld [vmem:[#allocation7 + $0x14] sm:$0xf]
    %v248 = vld [vmem:[#allocation7 + $0x18] sm:$0xf]
    %v249 = vld [vmem:[#allocation7 + $0x1c] sm:$0xf]
    %v250 = vld [vmem:[#allocation7 + $0x20] sm:$0xf]
    %v251 = vld [vmem:[#allocation7 + $0x24] sm:$0xf]
    %v252 = vld [vmem:[#allocation7 + $0x28] sm:$0xf]
    %v253 = vld [vmem:[#allocation7 + $0x2c] sm:$0xf]
    %v254 = vld [vmem:[#allocation7 + $0x30] sm:$0xf]
    %v255 = vld [vmem:[#allocation7 + $0x34] sm:$0xf]
    %v256 = vld [vmem:[#allocation7 + $0x38] sm:$0xf]
    %v257 = vld [vmem:[#allocation7 + $0x3c] sm:$0xf]
    %v258 = vperm.slane %v100, 3
    %v275 = vunpack.c.l.b16 %v242
    %v276 = vunpack.c.l.b16 %v243
    %v277 = vunpack.c.l.b16 %v244
    %v278 = vunpack.c.l.b16 %v245
    %v279 = vunpack.c.l.b16 %v246
    %v280 = vunpack.c.l.b16 %v247
    %v281 = vunpack.c.l.b16 %v248
    %v282 = vunpack.c.l.b16 %v249
    %v283 = vunpack.c.l.b16 %v250
    %v284 = vunpack.c.l.b16 %v251
    %v285 = vunpack.c.l.b16 %v252
    %v286 = vunpack.c.l.b16 %v253
    %v287 = vunpack.c.l.b16 %v254
    %v288 = vunpack.c.l.b16 %v255
    %v289 = vunpack.c.l.b16 %v256
    %v290 = vunpack.c.l.b16 %v257
    %v291 = vpack.c.b16 %v276, %v275
    %v292 = vpack.c.b16 %v278, %v277
    %v293 = vpack.c.b16 %v280, %v279
    %v294 = vpack.c.b16 %v282, %v281
    %v295 = vpack.c.b16 %v284, %v283
    %v296 = vpack.c.b16 %v286, %v285
    %v297 = vpack.c.b16 %v288, %v287
    %v298 = vpack.c.b16 %v290, %v289
    %307 = vmatpush.bf16.msra.mxu0 %v298
    %308 = vmatpush.bf16.msra.mxu0 %v297
    %309 = vmatpush.bf16.msra.mxu0 %v296
    %310 = vmatpush.bf16.msra.mxu0 %v295
    %311 = vmatpush.bf16.msra.mxu0 %v294
    %312 = vmatpush.bf16.msra.mxu0 %v293
    %313 = vmatpush.bf16.msra.mxu0 %v292
    %314 = vmatpush.bf16.msra.mxu0 %v291
    %315 = vmatmul.bf16.gmra.mxu0 %v241
    %v316 = vpop.f32.mrf.mxu0
    %v317 = vadd.f32 %v258, %v316
    %v318 = vpop.f32.mrf.mxu0
    %v319 = vadd.f32 %v258, %v318
    %320 = vdwg.mxu0
    %v321 = vmul.f32 %v317, %v108
    %v322 = vmul.f32 %v319, %v109
    %v323 = vadd.f32 %v321, %v322
    %v324 = vrot.slane %v323, 4
    %v325 = vadd.f32 %v323, %v324
    %v326 = vrot.slane %v325, 2
    %v327 = vadd.f32 %v325, %v326
    %v328 = vrot.slane %v327, 1
    %v329 = vadd.f32 %v327, %v328
    %v330 = vmul.f32 %v329, 0.125
    %v331 = vsub.f32 %v317, %v330
    %v332 = vsub.f32 %v319, %v330
    %v333 = vmul.f32 %v331, %v108
    %v334 = vmul.f32 %v332, %v109
    %v335 = vmul.f32 %v333, %v333
    %v336 = vmul.f32 %v334, %v334
    %v337 = vadd.f32 %v335, %v336
    %v338 = vrot.slane %v337, 4
    %v339 = vadd.f32 %v337, %v338
    %v340 = vrot.slane %v339, 2
    %v341 = vadd.f32 %v339, %v340
    %v342 = vrot.slane %v341, 1
    %v343 = vadd.f32 %v341, %v342
    %v344 = vmul.f32 %v343, 0.125
    %v345 = vadd.f32 %v344, 1e-05
    %v346 = vrsqrt.pop %v345
    %v347 = vmul.f32 %v346, %v345
    %v348 = vmul.f32 %v347, %v346
    %v349 = vmul.f32 0.5, %v348
    %v350 = vsub.f32 1.5, %v349
    %v351 = vmul.f32 %v346, %v350
    %vm352 = vweird.f32 %v345
    %vm353 = vweird.f32 %v346
    %vm354 = vmor %vm352, %vm353
    %v355 = vsel %vm354, %v346, %v351
    %v356 = vmul.f32 %v100, %v355
    %v357 = vperm.slane %v356, 4
    %v358 = vmul.f32 %v331, %v357
    %v359 = vmul.f32 %v332, %v357
    %v360 = vperm.slane %v100, 5
    %v361 = vadd.f32 %v358, %v360
    %v362 = vadd.f32 %v359, %v360
    %v363 = vmax.f32 %v361, 0.0
    %v364 = vmax.f32 %v362, 0.0
    %v365 = vpack.c.bf16 %v364, %v363
    %v366 = vld [vmem:[#allocation8] sm:$0xff]
    %v367 = vld [vmem:[#allocation8 + $0x8] sm:$0xff]
    %v368 = vld [vmem:[#allocation8 + $0x10] sm:$0xff]
    %v369 = vld [vmem:[#allocation8 + $0x18] sm:$0xff]
    %v370 = vld [vmem:[#allocation8 + $0x20] sm:$0xff]
    %v371 = vld [vmem:[#allocation8 + $0x28] sm:$0xff]
    %v372 = vld [vmem:[#allocation8 + $0x30] sm:$0xff]
    %v373 = vld [vmem:[#allocation8 + $0x38] sm:$0xff]
    %v374 = vld [vmem:[#allocation8 + $0x40] sm:$0xff]
    %v375 = vld [vmem:[#allocation8 + $0x48] sm:$0xff]
    %v376 = vld [vmem:[#allocation8 + $0x50] sm:$0xff]
    %v377 = vld [vmem:[#allocation8 + $0x58] sm:$0xff]
    %v378 = vld [vmem:[#allocation8 + $0x60] sm:$0xff]
    %v379 = vld [vmem:[#allocation8 + $0x68] sm:$0xff]
    %v380 = vld [vmem:[#allocation8 + $0x70] sm:$0xff]
    %v381 = vld [vmem:[#allocation8 + $0x78] sm:$0xff]
    %v398 = vunpack.c.l.b16 %v366
    %v399 = vunpack.c.h.b16 %v366
    %v400 = vunpack.c.l.b16 %v367
    %v401 = vunpack.c.h.b16 %v367
    %v402 = vunpack.c.l.b16 %v368
    %v403 = vunpack.c.h.b16 %v368
    %v404 = vunpack.c.l.b16 %v369
    %v405 = vunpack.c.h.b16 %v369
    %v406 = vunpack.c.l.b16 %v370
    %v407 = vunpack.c.h.b16 %v370
    %v408 = vunpack.c.l.b16 %v371
    %v409 = vunpack.c.h.b16 %v371
    %v410 = vunpack.c.l.b16 %v372
    %v411 = vunpack.c.h.b16 %v372
    %v412 = vunpack.c.l.b16 %v373
    %v413 = vunpack.c.h.b16 %v373
    %v414 = vunpack.c.l.b16 %v374
    %v415 = vunpack.c.h.b16 %v374
    %v416 = vunpack.c.l.b16 %v375
    %v417 = vunpack.c.h.b16 %v375
    %v418 = vunpack.c.l.b16 %v376
    %v419 = vunpack.c.h.b16 %v376
    %v420 = vunpack.c.l.b16 %v377
    %v421 = vunpack.c.h.b16 %v377
    %v422 = vunpack.c.l.b16 %v378
    %v423 = vunpack.c.h.b16 %v378
    %v424 = vunpack.c.l.b16 %v379
    %v425 = vunpack.c.h.b16 %v379
    %v426 = vunpack.c.l.b16 %v380
    %v427 = vunpack.c.h.b16 %v380
    %v428 = vunpack.c.l.b16 %v381
    %v429 = vunpack.c.h.b16 %v381
    %v430 = vpack.c.b16 %v400, %v398
    %v431 = vpack.c.b16 %v401, %v399
    %v432 = vpack.c.b16 %v404, %v402
    %v433 = vpack.c.b16 %v405, %v403
    %v434 = vpack.c.b16 %v408, %v406
    %v435 = vpack.c.b16 %v409, %v407
    %v436 = vpack.c.b16 %v412, %v410
    %v437 = vpack.c.b16 %v413, %v411
    %v438 = vpack.c.b16 %v416, %v414
    %v439 = vpack.c.b16 %v417, %v415
    %v440 = vpack.c.b16 %v420, %v418
    %v441 = vpack.c.b16 %v421, %v419
    %v442 = vpack.c.b16 %v424, %v422
    %v443 = vpack.c.b16 %v425, %v423
    %v444 = vpack.c.b16 %v428, %v426
    %v445 = vpack.c.b16 %v429, %v427
    %462 = vmatpush.bf16.msra.mxu0 %v444
    %463 = vmatpush.bf16.msra.mxu0 %v442
    %464 = vmatpush.bf16.msra.mxu0 %v440
    %465 = vmatpush.bf16.msra.mxu0 %v438
    %466 = vmatpush.bf16.msra.mxu0 %v436
    %467 = vmatpush.bf16.msra.mxu0 %v434
    %468 = vmatpush.bf16.msra.mxu0 %v432
    %469 = vmatpush.bf16.msra.mxu0 %v430
    %470 = vmatmul.bf16.gmra.mxu0 %v365
    %v471 = vpop.f32.mrf.mxu0
    %v472 = vadd.f32 0.0, %v471
    %v473 = vpop.f32.mrf.mxu0
    %v474 = vadd.f32 0.0, %v473
    %475 = vdwg.mxu0
    %476 = vmatpush.bf16.msra.mxu0 %v445
    %477 = vmatpush.bf16.msra.mxu0 %v443
    %478 = vmatpush.bf16.msra.mxu0 %v441
    %479 = vmatpush.bf16.msra.mxu0 %v439
    %480 = vmatpush.bf16.msra.mxu0 %v437
    %481 = vmatpush.bf16.msra.mxu0 %v435
    %482 = vmatpush.bf16.msra.mxu0 %v433
    %483 = vmatpush.bf16.msra.mxu0 %v431
    %484 = vmatmul.bf16.gmra.mxu0 %v365
    %v485 = vpop.f32.mrf.mxu0
    %v486 = vadd.f32 0.0, %v485
    %v487 = vpop.f32.mrf.mxu0
    %v488 = vadd.f32 0.0, %v487
    %489 = vdwg.mxu0
    %v490 = vperm.slane %v100, 6
    %v491 = vadd.f32 %v472, %v490
    %v492 = vadd.f32 %v474, %v490
    %v493 = vperm.slane %v100, 7
    %v494 = vadd.f32 %v486, %v493
    %v495 = vadd.f32 %v488, %v493
    %496 = vst [vmem:[#allocation11] sm:$0xff] %v491
    %497 = vst [vmem:[#allocation11 + $0x8] sm:$0xff] %v492
    %v498 = vmax.f32 %v494, 0.0
    %v499 = vmax.f32 %v495, 0.0
    %vm500 = vcmp.ne.f32.partialorder %v494, %v494
    %vm501 = vcmp.ne.f32.partialorder %v495, %v495
    %v502 = vadd.f32 %v494, 0.0
    %v503 = vadd.f32 %v495, 0.0
    %v504 = vand.u32 2147483647, %v494
    %v505 = vand.u32 2147483647, %v495
    %v506 = vsub.f32 0.0, %v504
    %v507 = vsub.f32 0.0, %v505
    %v508 = vmul.f32 %v506, 1.442695
    %v509 = vpow.pop %v508
    %v510 = vmul.f32 %v507, 1.442695
    %v511 = vpow.pop %v510
    %v512 = vadd.f32 %v509, 1.0
    %v513 = vlog2.pop %v512
    %v514 = vmul.f32 %v513, 0.6931472
    %v515 = vmul.f32 -0.5, %v509
    %v516 = vadd.f32 %v515, 1.0
    %v517 = vmul.f32 %v516, %v509
    %v518 = vand.u32 2147483647, %v509
    %vm519 = vcmp.lt.f32.partialorder %v518, 0.0004427343
    %v520 = vsel %vm519, %v517, %v514
    %v521 = vadd.f32 %v511, 1.0
    %v522 = vlog2.pop %v521
    %v523 = vmul.f32 %v522, 0.6931472
    %v524 = vmul.f32 -0.5, %v511
    %v525 = vadd.f32 %v524, 1.0
    %v526 = vmul.f32 %v525, %v511
    %v527 = vand.u32 2147483647, %v511
    %vm528 = vcmp.lt.f32.partialorder %v527, 0.0004427343
    %v529 = vsel %vm528, %v526, %v523
    %v530 = vadd.f32 %v498, %v520
    %v531 = vadd.f32 %v499, %v529
    %v532 = vsel %vm500, %v502, %v530
    %v533 = vsel %vm501, %v503, %v531
    %v534 = vadd.f32 %v532, 1e-07
    %v535 = vadd.f32 %v533, 1e-07
    %536 = vst [vmem:[#allocation12] sm:$0xff] %v534
    %537 = vst [vmem:[#allocation12 + $0x8] sm:$0xff] %v535
    // Predicated region
    $region42: #{tpu_custom_call.1} parent=1 // pred_check
      _
    $region43: #{tpu_custom_call.1} parent=1 // pred_check_branch
      %539 = sbr.rel (0) target = $region45
    $region44: #{tpu_custom_call.1} parent=1 // pred_region
      %541 = vsyncadd [#allocation4], 0
      %s542 = sshll.u32 [#allocation11], 4
      %s543 = int_to_ptr.vmem [resolvable:$true] %s542
      %s544 = sshll.u32 %s5, 4
      %s545 = int_to_ptr.hbm [resolvable:$true] %s544
      %550 = dma.vmem_to_hbm [thread:$0]  %s543, 256, %s545, [#allocation4], 128, 128, 8
    $region45: #{tpu_custom_call.1} parent=1 // pred_fallthru
      _
    // Predicated region
    $region46: #{tpu_custom_call.1} parent=1 // pred_check
      _
    $region47: #{tpu_custom_call.1} parent=1 // pred_check_branch
      %552 = sbr.rel (0) target = $region49
    $region48: #{tpu_custom_call.1} parent=1 // pred_region
      %554 = vsyncadd [#allocation13], 0
      %s555 = sshll.u32 [#allocation12], 4
      %s556 = int_to_ptr.vmem [resolvable:$true] %s555
      %s557 = sshll.u32 %s6, 4
      %s558 = int_to_ptr.hbm [resolvable:$true] %s557
      %563 = dma.vmem_to_hbm [thread:$0]  %s556, 256, %s558, [#allocation13], 128, 128, 8
    $region49: #{tpu_custom_call.1} parent=1 // pred_fallthru
      _
    // Predicated region
    $region50: #{tpu_custom_call.1} parent=1 // pred_check
      _
    $region51: #{tpu_custom_call.1} parent=1 // pred_check_branch
      %565 = sbr.rel (0) target = $region53
    $region52: #{tpu_custom_call.1} parent=1 // pred_region
      %567 = dma.done [#allocation4], 256
    $region53: #{tpu_custom_call.1} parent=1 // pred_fallthru
      _
    // Predicated region
    $region54: #{tpu_custom_call.1} parent=1 // pred_check
      _
    $region55: #{tpu_custom_call.1} parent=1 // pred_check_branch
      %569 = sbr.rel (0) target = $region57
    $region56: #{tpu_custom_call.1} parent=1 // pred_region
      %571 = dma.done [#allocation13], 256
    $region57: #{tpu_custom_call.1} parent=1 // pred_fallthru
      _
    %572 = vsyncpa [#allocation3], 1
    %573 = vsyncpa [#allocation6], 1
    %574 = vsyncpa [#allocation9], 1
    %575 = vsyncpa [#allocation4], 1
    %576 = vsyncpa [#allocation13], 1

</llo_original>
